<compile_context>
chip_gen: v5e
topology: v5e:2x2
jax: 0.10.0
libtpu: 0.0.40
codegen_flags: <defaults>
</compile_context>

<pallas_src>
import functools

import jax
import jax.numpy as jnp
import numpy as np
from jax.experimental import pallas as pl
from jax.experimental.pallas import tpu as pltpu


def _conv1dbrres_kernel(x_ref, w1_ref, sh1_ref, w2_ref, sh2_ref, o_ref):
    """One fused Conv1DBRRes block on a (C, tn) tile of points.

    x_ref:   (C, tn)  bf16   input points, channels on sublanes, points on lanes
    w1_ref:  (H, C)   bf16   BN1-folded conv1 weight
    sh1_ref: (H, 1)   f32    BN1-folded shift (conv bias + BN)
    w2_ref:  (C, H)   bf16   BN2-folded conv2 weight
    sh2_ref: (C, 1)   f32    BN2-folded shift
    o_ref:   (C, tn)  f32    output
    """
    x_bf = x_ref[...]                                   # (C, tn) bf16
    x32 = x_bf.astype(jnp.float32)                      # residual path in f32

    # conv1 (1x1) + BN1 + ReLU   -> (H, tn), lane-dense output
    h = jnp.dot(w1_ref[...], x_bf, preferred_element_type=jnp.float32)
    h = jnp.maximum(h + sh1_ref[...], 0.0)

    # conv2 (1x1) + BN2 + residual + ReLU -> (C, tn)
    y = jnp.dot(w2_ref[...], h.astype(jnp.bfloat16),
                preferred_element_type=jnp.float32)
    y = jnp.maximum(y + sh2_ref[...] + x32, 0.0)

    o_ref[...] = y.astype(o_ref.dtype)


def _round_up(v, m):
    return (v + m - 1) // m * m


@functools.partial(jax.jit, static_argnames=("tn",))
def conv1dbrres_forward(x, params, *, tn=512):
    """x: (B, C, N) f32 (NCW, like nn.Conv1d) -> (B, C, N) f32."""
    B, C, N = x.shape
    w1 = params["w1"].astype(jnp.bfloat16)      # (H, C)
    sh1 = params["sh1"].astype(jnp.float32)     # (H, 1)
    w2 = params["w2"].astype(jnp.bfloat16)      # (C, H)
    sh2 = params["sh2"].astype(jnp.float32)     # (C, 1)
    H = w1.shape[0]

    # Point-tile on the lane axis: multiple of 128, as large as requested.
    tn_eff = min(tn, _round_up(N, 128))
    n_pad = _round_up(N, tn_eff)
    xp = x if n_pad == N else jnp.pad(x, ((0, 0), (0, 0), (0, n_pad - N)))
    xp = xp.astype(jnp.bfloat16)

    grid = (B, n_pad // tn_eff)

    out = pl.pallas_call(
        _conv1dbrres_kernel,
        out_shape=jax.ShapeDtypeStruct((B, C, n_pad), jnp.float32),
        grid_spec=pltpu.PrefetchScalarGridSpec(
            num_scalar_prefetch=0,
            grid=grid,
            in_specs=[
                # activation tile: batch squeezed, channels full, tn points
                pl.BlockSpec((None, C, tn_eff), lambda b, j: (b, 0, j)),
                pl.BlockSpec((H, C), lambda b, j: (0, 0)),   # W1 (folded)
                pl.BlockSpec((H, 1), lambda b, j: (0, 0)),   # shift1
                pl.BlockSpec((C, H), lambda b, j: (0, 0)),   # W2 (folded)
                pl.BlockSpec((C, 1), lambda b, j: (0, 0)),   # shift2
            ],
            out_specs=pl.BlockSpec((None, C, tn_eff), lambda b, j: (b, 0, j)),
        ),
        compiler_params=pltpu.CompilerParams(
            dimension_semantics=("parallel", "parallel"),
            vmem_limit_bytes=32 * 1024 * 1024,
        ),
    )(xp, w1, sh1, w2, sh2)

    return out[:, :, :N]


def fold_conv_bn(w, b, gamma, beta, mean, var, eps=1e-5):
    """Fold conv bias + eval BatchNorm into (W_folded, shift_column)."""
    scale = gamma / jnp.sqrt(var + eps)            # (out,)
    w_folded = w * scale[:, None]                  # (out, in)
    shift = beta + (b - mean) * scale              # (out,)
    return w_folded, shift.reshape(-1, 1)


def make_conv1dbrres_params(key, in_channels, res_expansion=1.0, eps=1e-5):
    """Deterministic synthetic parameters matching Conv1DBRRes.__init__ shapes."""
    H = int(in_channels * res_expansion)
    ks = jax.random.split(key, 12)

    w1 = 0.2 * jax.random.normal(ks[0], (H, in_channels), jnp.float32)
    b1 = 0.1 * jax.random.normal(ks[1], (H,), jnp.float32)
    g1 = 1.0 + 0.1 * jax.random.normal(ks[2], (H,), jnp.float32)
    be1 = 0.1 * jax.random.normal(ks[3], (H,), jnp.float32)
    m1 = 0.05 * jax.random.normal(ks[4], (H,), jnp.float32)
    v1 = 1.0 + 0.1 * jax.random.uniform(ks[5], (H,), jnp.float32)

    w2 = 0.2 * jax.random.normal(ks[6], (in_channels, H), jnp.float32)
    b2 = 0.1 * jax.random.normal(ks[7], (in_channels,), jnp.float32)
    g2 = 1.0 + 0.1 * jax.random.normal(ks[8], (in_channels,), jnp.float32)
    be2 = 0.1 * jax.random.normal(ks[9], (in_channels,), jnp.float32)
    m2 = 0.05 * jax.random.normal(ks[10], (in_channels,), jnp.float32)
    v2 = 1.0 + 0.1 * jax.random.uniform(ks[11], (in_channels,), jnp.float32)

    w1f, sh1 = fold_conv_bn(w1, b1, g1, be1, m1, v1, eps)
    w2f, sh2 = fold_conv_bn(w2, b2, g2, be2, m2, v2, eps)
    return {"w1": w1f, "sh1": sh1, "w2": w2f, "sh2": sh2}


def conv1dbrres_reference(x, params, *, match_bf16=True):
    """Pure-JAX reference (same folded math). match_bf16 mirrors kernel casts."""
    w1, sh1 = params["w1"], params["sh1"]
    w2, sh2 = params["w2"], params["sh2"]
    if match_bf16:
        xc = x.astype(jnp.bfloat16)
        w1 = w1.astype(jnp.bfloat16)
        w2 = w2.astype(jnp.bfloat16)
        x_res = xc.astype(jnp.float32)
    else:
        xc, x_res = x, x

    h = jnp.einsum("hc,bcn->bhn", w1, xc, preferred_element_type=jnp.float32)
    h = jnp.maximum(h + sh1[None], 0.0)
    if match_bf16:
        h = h.astype(jnp.bfloat16)
    y = jnp.einsum("ch,bhn->bcn", w2, h, preferred_element_type=jnp.float32)
    return jnp.maximum(y + sh2[None] + x_res, 0.0)


if __name__ == "__main__":
    key = jax.random.PRNGKey(0)
    kx, kp = jax.random.split(key)

    B, C, N = 2, 8, 1024        # NCW like nn.Conv1d: (batch, channels, points)
    x = jax.random.normal(kx, (B, C, N), jnp.float32)
    params = make_conv1dbrres_params(kp, in_channels=C, res_expansion=1.0)

    out = conv1dbrres_forward(x, params, tn=512)
    out = jax.block_until_ready(out)
    assert out.shape == (B, C, N)

    # Bit-for-bit-style check against a reference that mirrors the kernel's
    # bf16 matmuls / f32 accumulation.
    ref_matched = conv1dbrres_reference(x, params, match_bf16=True)
    np.testing.assert_allclose(np.asarray(out), np.asarray(ref_matched),
                               rtol=1e-4, atol=1e-4)

    # Looser semantic check against full-f32 math (original module precision).
    ref_f32 = conv1dbrres_reference(x, params, match_bf16=False)
    np.testing.assert_allclose(np.asarray(out), np.asarray(ref_f32),
                               rtol=5e-2, atol=5e-2)

    print("KERNEL_OK")
</pallas_src>

<mosaic_0001>
module attributes {stable_mosaic.version = 11 : i64} {
  func.func @_conv1dbrres_kernel(%arg0: i32, %arg1: i32, %arg2: memref<1x8x512xbf16, #tpu.memory_space<vmem>>, %arg3: memref<8x8xbf16, #tpu.memory_space<vmem>>, %arg4: memref<8x1xf32, #tpu.memory_space<vmem>>, %arg5: memref<8x8xbf16, #tpu.memory_space<vmem>>, %arg6: memref<8x1xf32, #tpu.memory_space<vmem>>, %arg7: memref<1x8x512xf32, #tpu.memory_space<vmem>>) attributes {dimension_semantics = [#tpu.dimension_semantics<parallel>, #tpu.dimension_semantics<parallel>], iteration_bounds = array<i64: 2, 2>, scalar_prefetch = 0 : i64, scratch_operands = 0 : i64, tpu.core_type = #tpu.core_type<tc>, window_params = [{transform_indices = @transform_0, window_bounds = array<i64: 1, 8, 512>}, {pipeline_mode = #tpu.pipeline_mode<synchronous>, transform_indices = @transform_1, window_bounds = array<i64: 8, 8>}, {pipeline_mode = #tpu.pipeline_mode<synchronous>, transform_indices = @transform_2, window_bounds = array<i64: 8, 1>}, {pipeline_mode = #tpu.pipeline_mode<synchronous>, transform_indices = @transform_3, window_bounds = array<i64: 8, 8>}, {pipeline_mode = #tpu.pipeline_mode<synchronous>, transform_indices = @transform_4, window_bounds = array<i64: 8, 1>}, {transform_indices = @transform_5, window_bounds = array<i64: 1, 8, 512>}]} {
    %c0 = arith.constant 0 : index
    %c0_0 = arith.constant 0 : index
    %c0_1 = arith.constant 0 : index
    %0 = vector.load %arg2[%c0, %c0_0, %c0_1] : memref<1x8x512xbf16, #tpu.memory_space<vmem>>, vector<1x8x512xbf16>
    %1 = vector.shape_cast %0 : vector<1x8x512xbf16> to vector<8x512xbf16>
    %2 = arith.extf %1 : vector<8x512xbf16> to vector<8x512xf32>
    %c0_2 = arith.constant 0 : index
    %c0_3 = arith.constant 0 : index
    %3 = vector.load %arg3[%c0_2, %c0_3] : memref<8x8xbf16, #tpu.memory_space<vmem>>, vector<8x8xbf16>
    %cst = arith.constant dense<0.000000e+00> : vector<8x512xf32>
    %4 = tpu.matmul %3, %1, %cst {dimension_numbers = #tpu.dot_dimension_numbers<[1], [0], [0], [1], [0, 0, 1, 1], [], []>} : vector<8x8xbf16>, vector<8x512xbf16>, vector<8x512xf32> -> vector<8x512xf32>
    %c0_4 = arith.constant 0 : index
    %c0_5 = arith.constant 0 : index
    %5 = vector.load %arg4[%c0_4, %c0_5] : memref<8x1xf32, #tpu.memory_space<vmem>>, vector<8x1xf32>
    %6 = vector.broadcast %5 : vector<8x1xf32> to vector<8x512xf32>
    %7 = arith.addf %4, %6 : vector<8x512xf32>
    %cst_6 = arith.constant 0.000000e+00 : f32
    %8 = vector.broadcast %cst_6 : f32 to vector<8x512xf32>
    %9 = arith.maximumf %7, %8 : vector<8x512xf32>
    %c0_7 = arith.constant 0 : index
    %c0_8 = arith.constant 0 : index
    %10 = vector.load %arg5[%c0_7, %c0_8] : memref<8x8xbf16, #tpu.memory_space<vmem>>, vector<8x8xbf16>
    %11 = arith.truncf %9 : vector<8x512xf32> to vector<8x512xbf16>
    %cst_9 = arith.constant dense<0.000000e+00> : vector<8x512xf32>
    %12 = tpu.matmul %10, %11, %cst_9 {dimension_numbers = #tpu.dot_dimension_numbers<[1], [0], [0], [1], [0, 0, 1, 1], [], []>} : vector<8x8xbf16>, vector<8x512xbf16>, vector<8x512xf32> -> vector<8x512xf32>
    %c0_10 = arith.constant 0 : index
    %c0_11 = arith.constant 0 : index
    %13 = vector.load %arg6[%c0_10, %c0_11] : memref<8x1xf32, #tpu.memory_space<vmem>>, vector<8x1xf32>
    %14 = vector.broadcast %13 : vector<8x1xf32> to vector<8x512xf32>
    %15 = arith.addf %12, %14 : vector<8x512xf32>
    %16 = arith.addf %15, %2 : vector<8x512xf32>
    %cst_12 = arith.constant 0.000000e+00 : f32
    %17 = vector.broadcast %cst_12 : f32 to vector<8x512xf32>
    %18 = arith.maximumf %16, %17 : vector<8x512xf32>
    %c0_13 = arith.constant 0 : index
    %c0_14 = arith.constant 0 : index
    %c0_15 = arith.constant 0 : index
    %19 = vector.load %arg7[%c0_13, %c0_14, %c0_15] : memref<1x8x512xf32, #tpu.memory_space<vmem>>, vector<1x8x512xf32>
    %20 = vector.shape_cast %19 : vector<1x8x512xf32> to vector<8x512xf32>
    %21 = vector.shape_cast %18 : vector<8x512xf32> to vector<1x8x512xf32>
    tpu.vector_store %arg7[%c0_13, %c0_14, %c0_15], %21 {strides = array<i32>} : memref<1x8x512xf32, #tpu.memory_space<vmem>>, vector<1x8x512xf32>,
    return
  }
  func.func @transform_0(%arg0: i32, %arg1: i32) -> (i32, i32, i32) {
    %c0_i32 = arith.constant 0 : i32
    %c0_i32_0 = arith.constant 0 : i32
    return %arg0, %c0_i32, %arg1 : i32, i32, i32
  }
  func.func @transform_1(%arg0: i32, %arg1: i32) -> (i32, i32) {
    %c0_i32 = arith.constant 0 : i32
    %c0_i32_0 = arith.constant 0 : i32
    %c0_i32_1 = arith.constant 0 : i32
    return %c0_i32, %c0_i32_0 : i32, i32
  }
  func.func @transform_2(%arg0: i32, %arg1: i32) -> (i32, i32) {
    %c0_i32 = arith.constant 0 : i32
    %c0_i32_0 = arith.constant 0 : i32
    %c0_i32_1 = arith.constant 0 : i32
    return %c0_i32, %c0_i32_0 : i32, i32
  }
  func.func @transform_3(%arg0: i32, %arg1: i32) -> (i32, i32) {
    %c0_i32 = arith.constant 0 : i32
    %c0_i32_0 = arith.constant 0 : i32
    %c0_i32_1 = arith.constant 0 : i32
    return %c0_i32, %c0_i32_0 : i32, i32
  }
  func.func @transform_4(%arg0: i32, %arg1: i32) -> (i32, i32) {
    %c0_i32 = arith.constant 0 : i32
    %c0_i32_0 = arith.constant 0 : i32
    %c0_i32_1 = arith.constant 0 : i32
    return %c0_i32, %c0_i32_0 : i32, i32
  }
  func.func @transform_5(%arg0: i32, %arg1: i32) -> (i32, i32, i32) {
    %c0_i32 = arith.constant 0 : i32
    %c0_i32_0 = arith.constant 0 : i32
    return %arg0, %c0_i32, %arg1 : i32, i32, i32
  }
}

</mosaic_0001>

<llo_original>
// kernel: conv1dbrres_forward.1
$region0: #{conv1dbrres_forward.1}
  #allocation0 [shape = 'u32[]', space=smem, size = 0x4, offset = 0x4, fixed_abs, tag = 'smem constant byte address 0x4 - core index']
  #allocation1 [shape = 'u32[72,128]{1,0:T(1,128)}', space=vmem, size = 0x9000, scoped, tag = 'internal scratch']
  %s0 = inlined_call_operand.vmem [shape: bf16[2,8,1024], index: 0, kind: input, shape index: {}]
  %s1 = inlined_call_operand.vmem [shape: bf16[8,8], index: 1, kind: input, shape index: {}]
  %s2 = inlined_call_operand.vmem [shape: f32[8,1], index: 2, kind: input, shape index: {}]
  %s3 = inlined_call_operand.vmem [shape: bf16[8,8], index: 3, kind: input, shape index: {}]
  %s4 = inlined_call_operand.vmem [shape: f32[8,1], index: 4, kind: input, shape index: {}]
  %s5 = inlined_call_operand.hbm [shape: f32[2,8,1024], index: 5, kind: output, shape index: {}]
  %s6 = sld [smem:[#allocation0]]
  $region53: #{conv1dbrres_forward.1} parent=0
    _
  %s8 = ssub.s32 1, %s6
  %s9 = scalar_select 0, %s8, %s6
  $region1: #{conv1dbrres_forward.1} parent=0
    #allocation2 [shape = 'u8[32768]{0}', space=vmem, size = 0x8000, scoped, tag = 'output window, operand 0']
    #allocation3 [shape = 's32[2]{0}', space=sflag, size = 0x8, scoped, tag = 'scoped memory for conv1dbrres_forward.1']
    %10 = vsyncpa [#allocation3], 0
    %s11 = scalar_lea.sflag [#allocation3], 1
    %12 = vsyncpa %s11, 0
    loop: start=0, step=1, limit=6
    $region2: #{conv1dbrres_forward.1} parent=1 // loop_pre_header
      _
    $region3: #{conv1dbrres_forward.1} parent=1 // loop_header
      %s14 = sphi 0, %s18
      %p15 = scmp.ge.s32.totalorder %s14, 6
      %s21 = sphi 0, %s33
      %s22 = sphi 0, %s29
      %s23 = sphi 0, %s21
      %s24 = sphi 0, %s22
      %s25 = sphi 0, %s23
      %s26 = sphi 0, %s24
      %s38 = sphi 0, %s40
      %s41 = sphi 0, %s38
      %s42 = sphi 0, %s41
      %s58 = sphi 0, %s42
      %s62 = sphi 0, %s62
      %s64 = sphi 0, %s62
      %s65 = sphi 0, %s64
      %s79 = sphi 0, %s65
      %s83 = sphi 0, %s83
      %s85 = sphi 0, %s83
      %s86 = sphi 0, %s85
      %s100 = sphi 0, %s86
      %s104 = sphi 0, %s104
      %s106 = sphi 0, %s104
      %s107 = sphi 0, %s106
      %s121 = sphi 0, %s107
      %s125 = sphi 0, %s125
      %s127 = sphi 0, %s125
      %s128 = sphi 0, %s127
      %s142 = sphi 0, %s128
      %s150 = sphi 0, %s152
      %s153 = sphi 0, %s150
      %s154 = sphi 0, %s153
      %s170 = sphi 0, %s154
    $region4: #{conv1dbrres_forward.1} parent=1 // loop_header_branch
      %17 = sbr.rel (%p15) target = $region8
    $region5: #{conv1dbrres_forward.1} parent=1 // loop_body
      %s19 = ssub.s32 %s14, 1
      %s20 = ssub.s32 %s14, 2
      %s27 = sadd.s32 1, %s22
      %p28 = scmp.ge.s32.totalorder %s27, 2
      %s29 = scalar_select %p28, 0, %s27
      %s30 = sadd.s32 1, %s21
      %s31 = scalar_select %p28, %s30, %s21
      %p32 = scmp.ge.s32.totalorder %s31, 2
      %s33 = scalar_select %p32, 0, %s31
      %s34 = ssub.s32 %s21, %s33
      %s35 = ssub.s32 %s22, %s29
      %s36 = sor.u32 %s34, %s35
      %p37 = scmp.eq.s32.totalorder %s36, 0
      %s39 = sadd.s32 %s38, 1
      %s40 = scalar_select %p37, %s38, %s39
      %p43 = pneg %p37
      %p44 = scmp.eq.s32.totalorder %s14, 3
      %p45 = por %p43, %p44
      %p46 = scmp.ne.s32.totalorder %s38, %s41
      %p47 = scmp.eq.s32.totalorder %s14, 0
      %p48 = por %p46, %p47
      %p49 = scmp.ne.s32.totalorder %s38, %s41
      %p50 = scmp.eq.s32.totalorder %s19, 3
      %p51 = por %p49, %p50
      %p52 = scmp.ne.s32.totalorder %s41, %s42
      %p53 = scmp.eq.s32.totalorder %s19, 0
      %p54 = por %p52, %p53
      %p55 = scmp.ne.s32.totalorder %s41, %s42
      %p56 = scmp.eq.s32.totalorder %s20, 3
      %p57 = por %p55, %p56
      %p59 = scmp.ne.s32.totalorder %s42, %s58
      %p60 = scmp.eq.s32.totalorder %s20, 0
      %p61 = por %p59, %p60
      %s63 = sadd.s32 %s62, 1
      %p66 = scmp.eq.s32.totalorder %s14, 3
      %p67 = scmp.ne.s32.totalorder %s62, %s64
      %p68 = scmp.eq.s32.totalorder %s14, 0
      %p69 = por %p67, %p68
      %p70 = scmp.ne.s32.totalorder %s62, %s64
      %p71 = scmp.eq.s32.totalorder %s19, 3
      %p72 = por %p70, %p71
      %p73 = scmp.ne.s32.totalorder %s64, %s65
      %p74 = scmp.eq.s32.totalorder %s19, 0
      %p75 = por %p73, %p74
      %p76 = scmp.ne.s32.totalorder %s64, %s65
      %p77 = scmp.eq.s32.totalorder %s20, 3
      %p78 = por %p76, %p77
      %p80 = scmp.ne.s32.totalorder %s65, %s79
      %p81 = scmp.eq.s32.totalorder %s20, 0
      %p82 = por %p80, %p81
      %s84 = sadd.s32 %s83, 1
      %p87 = scmp.eq.s32.totalorder %s14, 3
      %p88 = scmp.ne.s32.totalorder %s83, %s85
      %p89 = scmp.eq.s32.totalorder %s14, 0
      %p90 = por %p88, %p89
      %p91 = scmp.ne.s32.totalorder %s83, %s85
      %p92 = scmp.eq.s32.totalorder %s19, 3
      %p93 = por %p91, %p92
      %p94 = scmp.ne.s32.totalorder %s85, %s86
      %p95 = scmp.eq.s32.totalorder %s19, 0
      %p96 = por %p94, %p95
      %p97 = scmp.ne.s32.totalorder %s85, %s86
      %p98 = scmp.eq.s32.totalorder %s20, 3
      %p99 = por %p97, %p98
      %p101 = scmp.ne.s32.totalorder %s86, %s100
      %p102 = scmp.eq.s32.totalorder %s20, 0
      %p103 = por %p101, %p102
      %s105 = sadd.s32 %s104, 1
      %p108 = scmp.eq.s32.totalorder %s14, 3
      %p109 = scmp.ne.s32.totalorder %s104, %s106
      %p110 = scmp.eq.s32.totalorder %s14, 0
      %p111 = por %p109, %p110
      %p112 = scmp.ne.s32.totalorder %s104, %s106
      %p113 = scmp.eq.s32.totalorder %s19, 3
      %p114 = por %p112, %p113
      %p115 = scmp.ne.s32.totalorder %s106, %s107
      %p116 = scmp.eq.s32.totalorder %s19, 0
      %p117 = por %p115, %p116
      %p118 = scmp.ne.s32.totalorder %s106, %s107
      %p119 = scmp.eq.s32.totalorder %s20, 3
      %p120 = por %p118, %p119
      %p122 = scmp.ne.s32.totalorder %s107, %s121
      %p123 = scmp.eq.s32.totalorder %s20, 0
      %p124 = por %p122, %p123
      %s126 = sadd.s32 %s125, 1
      %p129 = scmp.eq.s32.totalorder %s14, 3
      %p130 = scmp.ne.s32.totalorder %s125, %s127
      %p131 = scmp.eq.s32.totalorder %s14, 0
      %p132 = por %p130, %p131
      %p133 = scmp.ne.s32.totalorder %s125, %s127
      %p134 = scmp.eq.s32.totalorder %s19, 3
      %p135 = por %p133, %p134
      %p136 = scmp.ne.s32.totalorder %s127, %s128
      %p137 = scmp.eq.s32.totalorder %s19, 0
      %p138 = por %p136, %p137
      %p139 = scmp.ne.s32.totalorder %s127, %s128
      %p140 = scmp.eq.s32.totalorder %s20, 3
      %p141 = por %p139, %p140
      %p143 = scmp.ne.s32.totalorder %s128, %s142
      %p144 = scmp.eq.s32.totalorder %s20, 0
      %p145 = por %p143, %p144
      %s146 = ssub.s32 %s21, %s33
      %s147 = ssub.s32 %s22, %s29
      %s148 = sor.u32 %s146, %s147
      %p149 = scmp.eq.s32.totalorder %s148, 0
      %s151 = sadd.s32 %s150, 1
      %s152 = scalar_select %p149, %s150, %s151
      %p155 = pneg %p149
      %p156 = scmp.eq.s32.totalorder %s14, 3
      %p157 = por %p155, %p156
      %p158 = scmp.ne.s32.totalorder %s150, %s153
      %p159 = scmp.eq.s32.totalorder %s14, 0
      %p160 = por %p158, %p159
      %p161 = scmp.ne.s32.totalorder %s150, %s153
      %p162 = scmp.eq.s32.totalorder %s19, 3
      %p163 = por %p161, %p162
      %p164 = scmp.ne.s32.totalorder %s153, %s154
      %p165 = scmp.eq.s32.totalorder %s19, 0
      %p166 = por %p164, %p165
      %p167 = scmp.ne.s32.totalorder %s153, %s154
      %p168 = scmp.eq.s32.totalorder %s20, 3
      %p169 = por %p167, %p168
      %p171 = scmp.ne.s32.totalorder %s154, %s170
      %p172 = scmp.eq.s32.totalorder %s20, 0
      %p173 = por %p171, %p172
      %p174 = scmp.le.s32.totalorder 1, %s14
      %p175 = scmp.lt.s32.totalorder %s14, 5
      %p176 = pnand %p174, %p175
      %p177 = pneg %p176
      // Predicated region
      $region9: #{conv1dbrres_forward.1} parent=5 // pred_check
        _
      $region10: #{conv1dbrres_forward.1} parent=5 // pred_check_branch
        %179 = sbr.rel (%p176) target = $region12
      $region11: #{conv1dbrres_forward.1} parent=5 // pred_region
        %s180 = ssub.s32 %s14, 1
        // Predicated region
        $region13: #{conv1dbrres_forward.1} parent=11 // pred_check
          %p181 = pneg %p75
        $region14: #{conv1dbrres_forward.1} parent=11 // pred_check_branch
          %183 = sbr.rel (%p181) target = $region16
        $region15: #{conv1dbrres_forward.1} parent=11 // pred_region
          _
        $region16: #{conv1dbrres_forward.1} parent=11 // pred_fallthru
          _
        // Predicated region
        $region17: #{conv1dbrres_forward.1} parent=11 // pred_check
          %p184 = pneg %p96
        $region18: #{conv1dbrres_forward.1} parent=11 // pred_check_branch
          %186 = sbr.rel (%p184) target = $region20
        $region19: #{conv1dbrres_forward.1} parent=11 // pred_region
          _
        $region20: #{conv1dbrres_forward.1} parent=11 // pred_fallthru
          _
        // Predicated region
        $region21: #{conv1dbrres_forward.1} parent=11 // pred_check
          %p187 = pneg %p117
        $region22: #{conv1dbrres_forward.1} parent=11 // pred_check_branch
          %189 = sbr.rel (%p187) target = $region24
        $region23: #{conv1dbrres_forward.1} parent=11 // pred_region
          _
        $region24: #{conv1dbrres_forward.1} parent=11 // pred_fallthru
          _
        // Predicated region
        $region25: #{conv1dbrres_forward.1} parent=11 // pred_check
          %p190 = pneg %p138
        $region26: #{conv1dbrres_forward.1} parent=11 // pred_check_branch
          %192 = sbr.rel (%p190) target = $region28
        $region27: #{conv1dbrres_forward.1} parent=11 // pred_region
          _
        $region28: #{conv1dbrres_forward.1} parent=11 // pred_fallthru
          _
      $region12: #{conv1dbrres_forward.1} parent=5 // pred_fallthru
        _
      %p193 = scmp.lt.s32.totalorder %s14, 4
      // Predicated region
      $region29: #{conv1dbrres_forward.1} parent=5 // pred_check
        %p194 = pneg %p193
      $region30: #{conv1dbrres_forward.1} parent=5 // pred_check_branch
        %196 = sbr.rel (%p194) target = $region32
      $region31: #{conv1dbrres_forward.1} parent=5 // pred_region
        // Predicated region
        $region33: #{conv1dbrres_forward.1} parent=31 // pred_check
          %p197 = pneg %p48
        $region34: #{conv1dbrres_forward.1} parent=31 // pred_check_branch
          %199 = sbr.rel (%p197) target = $region36
        $region35: #{conv1dbrres_forward.1} parent=31 // pred_region
          %s200 = smul.u32 4, %s22
          %p201 = scmp.lt.s32.totalorder %s21, 1
          %s202 = scalar_select %p201, %s21, 1
          %p203 = scmp.lt.s32.totalorder %s200, 7
          %s204 = scalar_select %p203, %s200, 7
          %s205 = smul.addr %s202, 8
          %s206 = sadd.s32 %s204, %s205
          %s207 = smul.addr %s206, 4
          %s208 = scalar_lea.vmem %s0, %s207
          %s209 = smul.u32 4, %s22
        $region36: #{conv1dbrres_forward.1} parent=31 // pred_fallthru
          _
      $region32: #{conv1dbrres_forward.1} parent=5 // pred_fallthru
        _
      %p210 = scmp.le.s32.totalorder 1, %s14
      %p211 = scmp.lt.s32.totalorder %s14, 5
      %p212 = pnand %p210, %p211
      %p213 = pneg %p212
      // Predicated region
      $region37: #{conv1dbrres_forward.1} parent=5 // pred_check
        _
      $region38: #{conv1dbrres_forward.1} parent=5 // pred_check_branch
        %215 = sbr.rel (%p212) target = $region40
      $region39: #{conv1dbrres_forward.1} parent=5 // pred_region
        %s216 = ssub.s32 %s14, 1
        %s217 = smul.u32 4, %s24
        %p218 = scmp.lt.s32.totalorder %s23, 1
        %s219 = scalar_select %p218, %s23, 1
        %p220 = scmp.lt.s32.totalorder %s217, 7
        %s221 = scalar_select %p220, %s217, 7
        %s222 = smul.addr %s219, 8
        %s223 = sadd.s32 %s221, %s222
        %s224 = smul.addr %s223, 4
        %s225 = scalar_lea.vmem %s0, %s224
        %p226 = pneg %p54
        %p227 = pneg %p51
        %p228 = pneg %p75
        %p229 = pneg %p72
        %p230 = pneg %p96
        %p231 = pneg %p93
        %p232 = pneg %p117
        %p233 = pneg %p114
        %p234 = pneg %p138
        %p235 = pneg %p135
        %p236 = pneg %p166
        %p237 = pneg %p163
        %s238 = sand.u32 %s153, 1
        %s239 = scalar_lea.sflag [#allocation3], %s238
        %s240 = sand.u32 %s153, 1
        %s241 = smul.addr %s240, 32
        %s242 = scalar_lea.vmem [#allocation2], %s241
        %s243 = smul.u32 4, %s24
        %p244 = scmp.lt.s32.totalorder %s23, 1
        %s245 = scalar_select %p244, %s23, 1
        %p246 = scmp.lt.s32.totalorder %s243, 7
        %s247 = scalar_select %p246, %s243, 7
        %s248 = smul.addr %s245, 8
        %s249 = sadd.s32 %s247, %s248
        %s250 = smul.addr %s249, 4
        %s251 = scalar_lea.vmem %s0, %s250
        %s252 = smul.u32 4, %s24
        %s253 = smul.u32 4, %s24
        %v255 = vld [vmem:[%s251] sm:$0xff]
        %v256 = vld [vmem:[%s251 + $0x8] sm:$0xff]
        %v257 = vunpack.c.l.bf16 %v255
        %v258 = vunpack.c.h.bf16 %v255
        %v259 = vunpack.c.l.bf16 %v256
        %v260 = vunpack.c.h.bf16 %v256
        %v261 = vld [vmem:[%s1] sm:$0xf]
        %v262 = vld [vmem:[%s2] sm:$0xff]
        %264 = vset.pattern.permute.xlu0 0
        %265 = vperm.xlu0 %264, %v262
        %v266 = vpop.permute.xlu0 %265
        %v270 = vunpack.c.l.b16 %v255
        %v271 = vunpack.c.h.b16 %v255
        %v272 = vunpack.c.l.b16 %v256
        %v273 = vunpack.c.h.b16 %v256
        %v274 = vpack.c.b16 %v270, %v270
        %v275 = vpack.c.b16 %v271, %v271
        %v276 = vpack.c.b16 %v272, %v272
        %v277 = vpack.c.b16 %v273, %v273
        %vm278 = vcmask 64512
        %v280 = vsel %vm278, %v261, 0
        %vm282 = vcmask 1043456
        %v284 = vsel %vm282, %v274, 0
        %v287 = vsel %vm282, %v275, 0
        %v290 = vsel %vm282, %v276, 0
        %v293 = vsel %vm282, %v277, 0
        %295 = vmatpush.bf16.msra.mxu0 0
        %296 = vmatpush.bf16.msra.mxu0 0
        %297 = vmatpush.bf16.msra.mxu0 0
        %298 = vmatpush.bf16.msra.mxu0 0
        %299 = vmatpush.bf16.msra.mxu0 0
        %300 = vmatpush.bf16.msra.mxu0 0
        %301 = vmatpush.bf16.msra.mxu0 0
        %302 = vmatpush.bf16.msra.mxu0 %v284
        %303 = vmatmul.bf16.gmra.mxu0 %v280
        %v304 = vpop.f32.mrf.mxu0
        %v305 = vadd.f32 %v266, %v304
        %v306 = vpop.f32.mrf.mxu0
        %307 = vdwg.mxu0
        %308 = vmatpush.bf16.msra.mxu0 0
        %309 = vmatpush.bf16.msra.mxu0 0
        %310 = vmatpush.bf16.msra.mxu0 0
        %311 = vmatpush.bf16.msra.mxu0 0
        %312 = vmatpush.bf16.msra.mxu0 0
        %313 = vmatpush.bf16.msra.mxu0 0
        %314 = vmatpush.bf16.msra.mxu0 0
        %315 = vmatpush.bf16.msra.mxu0 %v287
        %316 = vmatmul.bf16.gmra.mxu0 %v280
        %v317 = vpop.f32.mrf.mxu0
        %v318 = vadd.f32 %v266, %v317
        %v319 = vpop.f32.mrf.mxu0
        %320 = vdwg.mxu0
        %321 = vmatpush.bf16.msra.mxu0 0
        %322 = vmatpush.bf16.msra.mxu0 0
        %323 = vmatpush.bf16.msra.mxu0 0
        %324 = vmatpush.bf16.msra.mxu0 0
        %325 = vmatpush.bf16.msra.mxu0 0
        %326 = vmatpush.bf16.msra.mxu0 0
        %327 = vmatpush.bf16.msra.mxu0 0
        %328 = vmatpush.bf16.msra.mxu0 %v290
        %329 = vmatmul.bf16.gmra.mxu0 %v280
        %v330 = vpop.f32.mrf.mxu0
        %v331 = vadd.f32 %v266, %v330
        %v332 = vpop.f32.mrf.mxu0
        %333 = vdwg.mxu0
        %334 = vmatpush.bf16.msra.mxu0 0
        %335 = vmatpush.bf16.msra.mxu0 0
        %336 = vmatpush.bf16.msra.mxu0 0
        %337 = vmatpush.bf16.msra.mxu0 0
        %338 = vmatpush.bf16.msra.mxu0 0
        %339 = vmatpush.bf16.msra.mxu0 0
        %340 = vmatpush.bf16.msra.mxu0 0
        %341 = vmatpush.bf16.msra.mxu0 %v293
        %342 = vmatmul.bf16.gmra.mxu0 %v280
        %v343 = vpop.f32.mrf.mxu0
        %v344 = vadd.f32 %v266, %v343
        %v345 = vpop.f32.mrf.mxu0
        %346 = vdwg.mxu0
        %v347 = vmax.f32 %v305, 0.0
        %v348 = vmax.f32 %v318, 0.0
        %v349 = vmax.f32 %v331, 0.0
        %v350 = vmax.f32 %v344, 0.0
        %v351 = vld [vmem:[%s3] sm:$0xf]
        %v352 = vpack.c.bf16 %v347, %v347
        %v353 = vpack.c.bf16 %v348, %v348
        %v354 = vpack.c.bf16 %v349, %v349
        %v355 = vpack.c.bf16 %v350, %v350
        %v356 = vld [vmem:[%s4] sm:$0xff]
        %358 = vset.pattern.permute.xlu0 0
        %359 = vperm.xlu0 %358, %v356
        %v360 = vpop.permute.xlu0 %359
        %v363 = vsel %vm278, %v351, 0
        %v366 = vsel %vm282, %v352, 0
        %v369 = vsel %vm282, %v353, 0
        %v372 = vsel %vm282, %v354, 0
        %v375 = vsel %vm282, %v355, 0
        %377 = vmatpush.bf16.msra.mxu0 0
        %378 = vmatpush.bf16.msra.mxu0 0
        %379 = vmatpush.bf16.msra.mxu0 0
        %380 = vmatpush.bf16.msra.mxu0 0
        %381 = vmatpush.bf16.msra.mxu0 0
        %382 = vmatpush.bf16.msra.mxu0 0
        %383 = vmatpush.bf16.msra.mxu0 0
        %384 = vmatpush.bf16.msra.mxu0 %v366
        %385 = vmatmul.bf16.gmra.mxu0 %v363
        %v386 = vpop.f32.mrf.mxu0
        %v387 = vadd.f32 %v360, %v386
        %v388 = vpop.f32.mrf.mxu0
        %389 = vdwg.mxu0
        %390 = vmatpush.bf16.msra.mxu0 0
        %391 = vmatpush.bf16.msra.mxu0 0
        %392 = vmatpush.bf16.msra.mxu0 0
        %393 = vmatpush.bf16.msra.mxu0 0
        %394 = vmatpush.bf16.msra.mxu0 0
        %395 = vmatpush.bf16.msra.mxu0 0
        %396 = vmatpush.bf16.msra.mxu0 0
        %397 = vmatpush.bf16.msra.mxu0 %v369
        %398 = vmatmul.bf16.gmra.mxu0 %v363
        %v399 = vpop.f32.mrf.mxu0
        %v400 = vadd.f32 %v360, %v399
        %v401 = vpop.f32.mrf.mxu0
        %402 = vdwg.mxu0
        %403 = vmatpush.bf16.msra.mxu0 0
        %404 = vmatpush.bf16.msra.mxu0 0
        %405 = vmatpush.bf16.msra.mxu0 0
        %406 = vmatpush.bf16.msra.mxu0 0
        %407 = vmatpush.bf16.msra.mxu0 0
        %408 = vmatpush.bf16.msra.mxu0 0
        %409 = vmatpush.bf16.msra.mxu0 0
        %410 = vmatpush.bf16.msra.mxu0 %v372
        %411 = vmatmul.bf16.gmra.mxu0 %v363
        %v412 = vpop.f32.mrf.mxu0
        %v413 = vadd.f32 %v360, %v412
        %v414 = vpop.f32.mrf.mxu0
        %415 = vdwg.mxu0
        %416 = vmatpush.bf16.msra.mxu0 0
        %417 = vmatpush.bf16.msra.mxu0 0
        %418 = vmatpush.bf16.msra.mxu0 0
        %419 = vmatpush.bf16.msra.mxu0 0
        %420 = vmatpush.bf16.msra.mxu0 0
        %421 = vmatpush.bf16.msra.mxu0 0
        %422 = vmatpush.bf16.msra.mxu0 0
        %423 = vmatpush.bf16.msra.mxu0 %v375
        %424 = vmatmul.bf16.gmra.mxu0 %v363
        %v425 = vpop.f32.mrf.mxu0
        %v426 = vadd.f32 %v360, %v425
        %v427 = vpop.f32.mrf.mxu0
        %428 = vdwg.mxu0
        %v429 = vadd.f32 %v387, %v257
        %v430 = vadd.f32 %v400, %v258
        %v431 = vadd.f32 %v413, %v259
        %v432 = vadd.f32 %v426, %v260
        %v433 = vmax.f32 %v429, 0.0
        %v434 = vmax.f32 %v430, 0.0
        %v435 = vmax.f32 %v431, 0.0
        %v436 = vmax.f32 %v432, 0.0
        %437 = vst [vmem:[%s242] sm:$0xff] %v433
        %438 = vst [vmem:[%s242 + $0x8] sm:$0xff] %v434
        %439 = vst [vmem:[%s242 + $0x10] sm:$0xff] %v435
        %440 = vst [vmem:[%s242 + $0x18] sm:$0xff] %v436
        %s441 = sand.u32 %s153, 1
        %s442 = scalar_lea.sflag [#allocation3], %s441
        %s443 = sand.u32 %s153, 1
        %s444 = smul.addr %s443, 32
        %s445 = scalar_lea.vmem [#allocation2], %s444
        // Predicated region
        $region41: #{conv1dbrres_forward.1} parent=39 // pred_check
          %p446 = pneg %p163
        $region42: #{conv1dbrres_forward.1} parent=39 // pred_check_branch
          %448 = sbr.rel (%p446) target = $region44
        $region43: #{conv1dbrres_forward.1} parent=39 // pred_region
          %s449 = smul.u32 4, %s24
          %451 = vsyncadd %s442, 0
          %s452 = smul.addr %s23, 8
          %s453 = sadd.s32 %s449, %s452
          %s454 = smul.addr %s453, 8
          %s455 = scalar_lea.hbm %s5, %s454
          %s457 = sshll.u32 %s445, 4
          %s458 = int_to_ptr.vmem [resolvable:$true] %s457
          %s459 = sshll.u32 %s455, 4
          %s460 = int_to_ptr.hbm [resolvable:$true] %s459
          %462 = dma.vmem_to_hbm [thread:$0]  %s458, 512, %s460, %s442
        $region44: #{conv1dbrres_forward.1} parent=39 // pred_fallthru
          _
      $region40: #{conv1dbrres_forward.1} parent=5 // pred_fallthru
        _
      %p463 = scmp.le.s32.totalorder 2, %s14
      // Predicated region
      $region45: #{conv1dbrres_forward.1} parent=5 // pred_check
        %p464 = pneg %p463
      $region46: #{conv1dbrres_forward.1} parent=5 // pred_check_branch
        %466 = sbr.rel (%p464) target = $region48
      $region47: #{conv1dbrres_forward.1} parent=5 // pred_region
        %s467 = ssub.s32 %s14, 2
        // Predicated region
        $region49: #{conv1dbrres_forward.1} parent=47 // pred_check
          %p468 = pneg %p169
        $region50: #{conv1dbrres_forward.1} parent=47 // pred_check_branch
          %470 = sbr.rel (%p468) target = $region52
        $region51: #{conv1dbrres_forward.1} parent=47 // pred_region
          %s471 = sand.u32 %s154, 1
          %s472 = scalar_lea.sflag [#allocation3], %s471
          %s473 = sand.u32 %s154, 1
          %s474 = smul.addr %s473, 32
          %s475 = scalar_lea.vmem [#allocation2], %s474
          %477 = dma.done %s472, 512
        $region52: #{conv1dbrres_forward.1} parent=47 // pred_fallthru
          _
      $region48: #{conv1dbrres_forward.1} parent=5 // pred_fallthru
        _
    $region6: #{conv1dbrres_forward.1} parent=1 // loop_footer
      %s18 = sadd.s32 1, %s14
    $region7: #{conv1dbrres_forward.1} parent=1 // loop_footer_branch
      %13 = sbr.rel target = $region3
    $region8: #{conv1dbrres_forward.1} parent=1 // loop_exit
      _
    %478 = vsyncpa [#allocation3], 1
    %s479 = scalar_lea.sflag [#allocation3], 1
    %480 = vsyncpa %s479, 1

</llo_original>
